<compile_context>
chip_gen: v7x
topology: tpu7x:2x2x1
jax: 0.10.0
libtpu: 0.0.40
codegen_flags: <defaults>
</compile_context>

<pallas_src>
from functools import partial

import jax
import jax.numpy as jnp
from jax.experimental import pallas as pl
from jax.experimental.pallas import tpu as pltpu


def dqn_kernel(x_ref, w1_ref, b1_ref, w2_ref, b2_ref, w3_ref, b3_ref, o_ref):
    # fc1: bf16 operands, f32 MXU accumulation; bias-add + ReLU in f32 (VPU epilogue).
    h = jnp.dot(x_ref[...], w1_ref[...], preferred_element_type=jnp.float32)
    h = jnp.maximum(h + b1_ref[...], 0.0)
    # fc2 + ReLU (dominant 256x256 matmul).
    h = jnp.dot(h.astype(jnp.bfloat16), w2_ref[...], preferred_element_type=jnp.float32)
    h = jnp.maximum(h + b2_ref[...], 0.0)
    # fc3 (lane-padded to 128 output columns, no activation).
    out = jnp.dot(h.astype(jnp.bfloat16), w3_ref[...], preferred_element_type=jnp.float32)
    o_ref[...] = (out + b3_ref[...]).astype(o_ref.dtype)


def prepare_params(params):
    """One-time parameter prep: pad + cast so dqn_forward launches no extra XLA ops.

    Returns a tuple (w1, b1, w2, b2, w3, b3) with:
      * w1: [state_pad, hidden] bf16 (state_dim rows zero-padded up to a multiple of 16)
      * w2: [hidden, hidden] bf16
      * w3: [hidden, out_pad] bf16 (action_dim cols zero-padded up to a multiple of 128)
      * b1, b2: [1, hidden] f32;  b3: [1, out_pad] f32
    """
    w1, b1, w2, b2, w3, b3 = params
    state_dim, hidden = w1.shape
    action_dim = w3.shape[1]

    state_pad = ((state_dim + 15) // 16) * 16          # bf16 sublane quantum
    out_pad = max(128, ((action_dim + 127) // 128) * 128)  # lane-dense output

    w1p = jnp.zeros((state_pad, hidden), jnp.bfloat16).at[:state_dim, :].set(
        w1.astype(jnp.bfloat16))
    w3p = jnp.zeros((hidden, out_pad), jnp.bfloat16).at[:, :action_dim].set(
        w3.astype(jnp.bfloat16))
    b3p = jnp.zeros((1, out_pad), jnp.float32).at[:, :action_dim].set(b3)

    return (w1p, b1.astype(jnp.float32), w2.astype(jnp.bfloat16),
            b2.astype(jnp.float32), w3p, b3p)


@partial(jax.jit, static_argnames=("action_dim",))
def dqn_forward(x, prepared, action_dim):
    """Fused DQN forward. x: [B, state_dim] f32; prepared from prepare_params().

    Returns f32 [B, action_dim]. Batch pad / output slice stay on-device inside this jit.
    """
    w1, b1, w2, b2, w3, b3 = prepared
    B, state_dim = x.shape
    state_pad = w1.shape[0]
    n_out = w3.shape[1]

    # bf16 activations for the MXU; pad state columns to the prepared width.
    xb = x.astype(jnp.bfloat16)
    if state_pad != state_dim:
        xb = jnp.pad(xb, ((0, 0), (0, state_pad - state_dim)))

    # Batch tiling: small batches -> one grid step sized to the batch (no 128-row waste);
    # large batches -> TM=256 (fills v6e/v7x MXU rows, grid>=2 shards across v7x's 2 TCs).
    if B <= 512:
        tm = max(16, ((B + 15) // 16) * 16)
        b_pad = tm
    else:
        tm = 256
        b_pad = ((B + tm - 1) // tm) * tm
    if b_pad != B:
        xb = jnp.pad(xb, ((0, b_pad - B), (0, 0)))

    def resident(a):  # full-shape block + constant index_map -> stays VMEM-resident
        return pl.BlockSpec(a.shape, lambda i, _nd=a.ndim: (0,) * _nd)

    out = pl.pallas_call(
        dqn_kernel,
        out_shape=jax.ShapeDtypeStruct((b_pad, n_out), jnp.float32),
        grid=(b_pad // tm,),
        in_specs=[
            pl.BlockSpec((tm, state_pad), lambda i: (i, 0)),
            resident(w1), resident(b1),
            resident(w2), resident(b2),
            resident(w3), resident(b3),
        ],
        out_specs=pl.BlockSpec((tm, n_out), lambda i: (i, 0)),
        compiler_params=pltpu.CompilerParams(dimension_semantics=("parallel",)),
    )(xb, w1, b1, w2, b2, w3, b3)

    return out[:B, :action_dim]


def init_params(key, state_dim, action_dim, hidden_dim=256):
    """Deterministic parameter init (PyTorch-style uniform fan-in bounds)."""
    ks = jax.random.split(key, 6)

    def linear(kw, kb, fan_in, fan_out):
        bound = 1.0 / jnp.sqrt(fan_in)
        w = jax.random.uniform(kw, (fan_in, fan_out), jnp.float32, -bound, bound)  # [in, out]
        b = jax.random.uniform(kb, (1, fan_out), jnp.float32, -bound, bound)
        return w, b

    w1, b1 = linear(ks[0], ks[1], state_dim, hidden_dim)
    w2, b2 = linear(ks[2], ks[3], hidden_dim, hidden_dim)
    w3, b3 = linear(ks[4], ks[5], hidden_dim, action_dim)
    return (w1, b1, w2, b2, w3, b3)


def dqn_reference_f32(x, params):
    """Pure-JAX f32 reference matching PyTorch semantics."""
    w1, b1, w2, b2, w3, b3 = params
    h = jnp.maximum(x @ w1 + b1, 0.0)
    h = jnp.maximum(h @ w2 + b2, 0.0)
    return h @ w3 + b3


def dqn_reference_bf16(x, params):
    """Pure-JAX reference with the same bf16-operand / f32-accumulate recipe as the kernel."""
    w1, b1, w2, b2, w3, b3 = params
    dot = lambda a, w: jnp.dot(a.astype(jnp.bfloat16), w.astype(jnp.bfloat16),
                               preferred_element_type=jnp.float32)
    h = jnp.maximum(dot(x, w1) + b1, 0.0)
    h = jnp.maximum(dot(h, w2) + b2, 0.0)
    return dot(h, w3) + b3


if __name__ == "__main__":
    # Flappy Bird DQN: state_dim=12, action_dim=2, hidden_dim=256.
    batch, state_dim, action_dim, hidden_dim = 8, 12, 2, 256

    key = jax.random.PRNGKey(0)
    k_x, k_p, k_x2 = jax.random.split(key, 3)
    x = jax.random.normal(k_x, (batch, state_dim), jnp.float32)
    params = init_params(k_p, state_dim, action_dim, hidden_dim)

    prepared = prepare_params(params)  # one-time pad/cast (hoisted out of the hot path)

    # Small-batch (inference) path: single grid step, TM=16.
    out = dqn_forward(x, prepared, action_dim=action_dim)
    out = jax.block_until_ready(out)
    assert out.shape == (batch, action_dim)

    # Tight check vs. a reference using the same bf16-operand / f32-accumulate recipe.
    ref_bf16 = dqn_reference_bf16(x, params)
    assert jnp.allclose(out, ref_bf16, atol=2e-2, rtol=2e-2), "mismatch vs bf16 reference"

    # Looser check vs. the full-f32 PyTorch-semantics reference (bf16 operand quantization).
    ref_f32 = dqn_reference_f32(x, params)
    assert jnp.allclose(out, ref_f32, atol=1e-1, rtol=1e-1), "mismatch vs f32 reference"

    # Non-multiple-of-16 batch (exercises batch padding + slice path).
    x2 = jax.random.normal(k_x2, (37, state_dim), jnp.float32)
    out2 = jax.block_until_ready(dqn_forward(x2, prepared, action_dim=action_dim))
    assert out2.shape == (37, action_dim)
    assert jnp.allclose(out2, dqn_reference_bf16(x2, params), atol=2e-2, rtol=2e-2), \
        "mismatch on padded-batch path"

    print("KERNEL_OK")
</pallas_src>

<mosaic_0001>
module attributes {stable_mosaic.version = 11 : i64} {
  func.func @dqn_kernel(%arg0: i32, %arg1: memref<16x16xbf16, #tpu.memory_space<vmem>>, %arg2: memref<16x256xbf16, #tpu.memory_space<vmem>>, %arg3: memref<1x256xf32, #tpu.memory_space<vmem>>, %arg4: memref<256x256xbf16, #tpu.memory_space<vmem>>, %arg5: memref<1x256xf32, #tpu.memory_space<vmem>>, %arg6: memref<256x128xbf16, #tpu.memory_space<vmem>>, %arg7: memref<1x128xf32, #tpu.memory_space<vmem>>, %arg8: memref<16x128xf32, #tpu.memory_space<vmem>>) attributes {dimension_semantics = [#tpu.dimension_semantics<parallel>], iteration_bounds = array<i64: 1>, scalar_prefetch = 0 : i64, scratch_operands = 0 : i64, tpu.core_type = #tpu.core_type<tc>, window_params = [{transform_indices = @transform_0, window_bounds = array<i64: 16, 16>}, {pipeline_mode = #tpu.pipeline_mode<synchronous>, transform_indices = @transform_1, window_bounds = array<i64: 16, 256>}, {pipeline_mode = #tpu.pipeline_mode<synchronous>, transform_indices = @transform_2, window_bounds = array<i64: 1, 256>}, {pipeline_mode = #tpu.pipeline_mode<synchronous>, transform_indices = @transform_3, window_bounds = array<i64: 256, 256>}, {pipeline_mode = #tpu.pipeline_mode<synchronous>, transform_indices = @transform_4, window_bounds = array<i64: 1, 256>}, {pipeline_mode = #tpu.pipeline_mode<synchronous>, transform_indices = @transform_5, window_bounds = array<i64: 256, 128>}, {pipeline_mode = #tpu.pipeline_mode<synchronous>, transform_indices = @transform_6, window_bounds = array<i64: 1, 128>}, {transform_indices = @transform_7, window_bounds = array<i64: 16, 128>}]} {
    %c0 = arith.constant 0 : index
    %c0_0 = arith.constant 0 : index
    %0 = vector.load %arg1[%c0, %c0_0] : memref<16x16xbf16, #tpu.memory_space<vmem>>, vector<16x16xbf16>
    %c0_1 = arith.constant 0 : index
    %c0_2 = arith.constant 0 : index
    %1 = vector.load %arg2[%c0_1, %c0_2] : memref<16x256xbf16, #tpu.memory_space<vmem>>, vector<16x256xbf16>
    %cst = arith.constant dense<0.000000e+00> : vector<16x256xf32>
    %2 = tpu.matmul %0, %1, %cst {dimension_numbers = #tpu.dot_dimension_numbers<[1], [0], [0], [1], [0, 0, 1, 1], [], []>} : vector<16x16xbf16>, vector<16x256xbf16>, vector<16x256xf32> -> vector<16x256xf32>
    %c0_3 = arith.constant 0 : index
    %c0_4 = arith.constant 0 : index
    %3 = vector.load %arg3[%c0_3, %c0_4] : memref<1x256xf32, #tpu.memory_space<vmem>>, vector<1x256xf32>
    %4 = vector.broadcast %3 : vector<1x256xf32> to vector<16x256xf32>
    %5 = arith.addf %2, %4 : vector<16x256xf32>
    %cst_5 = arith.constant 0.000000e+00 : f32
    %6 = vector.broadcast %cst_5 : f32 to vector<16x256xf32>
    %7 = arith.maximumf %5, %6 : vector<16x256xf32>
    %8 = arith.truncf %7 : vector<16x256xf32> to vector<16x256xbf16>
    %c0_6 = arith.constant 0 : index
    %c0_7 = arith.constant 0 : index
    %9 = vector.load %arg4[%c0_6, %c0_7] : memref<256x256xbf16, #tpu.memory_space<vmem>>, vector<256x256xbf16>
    %cst_8 = arith.constant dense<0.000000e+00> : vector<16x256xf32>
    %10 = tpu.matmul %8, %9, %cst_8 {dimension_numbers = #tpu.dot_dimension_numbers<[1], [0], [0], [1], [0, 0, 1, 1], [], []>} : vector<16x256xbf16>, vector<256x256xbf16>, vector<16x256xf32> -> vector<16x256xf32>
    %c0_9 = arith.constant 0 : index
    %c0_10 = arith.constant 0 : index
    %11 = vector.load %arg5[%c0_9, %c0_10] : memref<1x256xf32, #tpu.memory_space<vmem>>, vector<1x256xf32>
    %12 = vector.broadcast %11 : vector<1x256xf32> to vector<16x256xf32>
    %13 = arith.addf %10, %12 : vector<16x256xf32>
    %cst_11 = arith.constant 0.000000e+00 : f32
    %14 = vector.broadcast %cst_11 : f32 to vector<16x256xf32>
    %15 = arith.maximumf %13, %14 : vector<16x256xf32>
    %16 = arith.truncf %15 : vector<16x256xf32> to vector<16x256xbf16>
    %c0_12 = arith.constant 0 : index
    %c0_13 = arith.constant 0 : index
    %17 = vector.load %arg6[%c0_12, %c0_13] : memref<256x128xbf16, #tpu.memory_space<vmem>>, vector<256x128xbf16>
    %cst_14 = arith.constant dense<0.000000e+00> : vector<16x128xf32>
    %18 = tpu.matmul %16, %17, %cst_14 {dimension_numbers = #tpu.dot_dimension_numbers<[1], [0], [0], [1], [0, 0, 1, 1], [], []>} : vector<16x256xbf16>, vector<256x128xbf16>, vector<16x128xf32> -> vector<16x128xf32>
    %c0_15 = arith.constant 0 : index
    %c0_16 = arith.constant 0 : index
    %19 = vector.load %arg7[%c0_15, %c0_16] : memref<1x128xf32, #tpu.memory_space<vmem>>, vector<1x128xf32>
    %20 = vector.broadcast %19 : vector<1x128xf32> to vector<16x128xf32>
    %21 = arith.addf %18, %20 : vector<16x128xf32>
    %c0_17 = arith.constant 0 : index
    %c0_18 = arith.constant 0 : index
    %22 = vector.load %arg8[%c0_17, %c0_18] : memref<16x128xf32, #tpu.memory_space<vmem>>, vector<16x128xf32>
    tpu.vector_store %arg8[%c0_17, %c0_18], %21 {strides = array<i32>} : memref<16x128xf32, #tpu.memory_space<vmem>>, vector<16x128xf32>,
    return
  }
  func.func @transform_0(%arg0: i32) -> (i32, i32) {
    %c0_i32 = arith.constant 0 : i32
    %c0_i32_0 = arith.constant 0 : i32
    return %arg0, %c0_i32 : i32, i32
  }
  func.func @transform_1(%arg0: i32) -> (i32, i32) {
    %c0_i32 = arith.constant 0 : i32
    %c0_i32_0 = arith.constant 0 : i32
    %c0_i32_1 = arith.constant 0 : i32
    return %c0_i32, %c0_i32_0 : i32, i32
  }
  func.func @transform_2(%arg0: i32) -> (i32, i32) {
    %c0_i32 = arith.constant 0 : i32
    %c0_i32_0 = arith.constant 0 : i32
    %c0_i32_1 = arith.constant 0 : i32
    return %c0_i32, %c0_i32_0 : i32, i32
  }
  func.func @transform_3(%arg0: i32) -> (i32, i32) {
    %c0_i32 = arith.constant 0 : i32
    %c0_i32_0 = arith.constant 0 : i32
    %c0_i32_1 = arith.constant 0 : i32
    return %c0_i32, %c0_i32_0 : i32, i32
  }
  func.func @transform_4(%arg0: i32) -> (i32, i32) {
    %c0_i32 = arith.constant 0 : i32
    %c0_i32_0 = arith.constant 0 : i32
    %c0_i32_1 = arith.constant 0 : i32
    return %c0_i32, %c0_i32_0 : i32, i32
  }
  func.func @transform_5(%arg0: i32) -> (i32, i32) {
    %c0_i32 = arith.constant 0 : i32
    %c0_i32_0 = arith.constant 0 : i32
    %c0_i32_1 = arith.constant 0 : i32
    return %c0_i32, %c0_i32_0 : i32, i32
  }
  func.func @transform_6(%arg0: i32) -> (i32, i32) {
    %c0_i32 = arith.constant 0 : i32
    %c0_i32_0 = arith.constant 0 : i32
    %c0_i32_1 = arith.constant 0 : i32
    return %c0_i32, %c0_i32_0 : i32, i32
  }
  func.func @transform_7(%arg0: i32) -> (i32, i32) {
    %c0_i32 = arith.constant 0 : i32
    %c0_i32_0 = arith.constant 0 : i32
    return %arg0, %c0_i32 : i32, i32
  }
}

</mosaic_0001>

<llo_original>
// kernel: dqn_forward.1
$region0: #{dqn_forward.1}
  #allocation0 [shape = 'u32[]', space=smem, size = 0x4, offset = 0x4, fixed_abs, tag = 'smem constant byte address 0x4 - core index']
  #allocation1 [shape = 'u32[144,128]{1,0:T(1,128)}', space=vmem, size = 0x12000, scoped, tag = 'internal scratch']
  %s0 = inlined_call_operand.vmem [shape: bf16[16,16], index: 0, kind: input, shape index: {}]
  %s1 = inlined_call_operand.vmem [shape: bf16[16,256], index: 1, kind: input, shape index: {}]
  %s2 = inlined_call_operand.vmem [shape: f32[1,256], index: 2, kind: input, shape index: {}]
  %s3 = inlined_call_operand.hbm [shape: bf16[256,256], index: 3, kind: input, shape index: {}]
  %s4 = inlined_call_operand.vmem [shape: f32[1,256], index: 4, kind: input, shape index: {}]
  %s5 = inlined_call_operand.hbm [shape: bf16[256,128], index: 5, kind: input, shape index: {}]
  %s6 = inlined_call_operand.vmem [shape: f32[1,128], index: 6, kind: input, shape index: {}]
  %s7 = inlined_call_operand.vmem [shape: f32[16,128], index: 7, kind: output, shape index: {}]
  %s8 = sld [smem:[#allocation0]]
  $region46: #{dqn_forward.1} parent=0
    _
  %s10 = ssub.s32 1, %s8
  %s11 = scalar_select 0, %s10, %s8
  $region1: #{dqn_forward.1} parent=0
    #allocation2 [shape = 'u8[131072]{0}', space=vmem, size = 0x20000, scoped, tag = 'input window, operand 3, single buffered']
    #allocation3 [shape = 's32[1]{0}', space=sflag, size = 0x4, scoped, tag = 'scoped memory for dqn_forward.1']
    #allocation4 [shape = 'u8[65536]{0}', space=vmem, size = 0x10000, scoped, tag = 'input window, operand 5, single buffered']
    #allocation5 [shape = 's32[1]{0}', space=sflag, size = 0x4, scoped, tag = 'scoped memory for dqn_forward.1']
    %12 = vsyncpa [#allocation3], 0
    %13 = vsyncpa [#allocation5], 0
    // Predicated region
    $region2: #{dqn_forward.1} parent=1 // pred_check
      _
    $region3: #{dqn_forward.1} parent=1 // pred_check_branch
      %15 = sbr.rel (0) target = $region5
    $region4: #{dqn_forward.1} parent=1 // pred_region
      _
    $region5: #{dqn_forward.1} parent=1 // pred_fallthru
      _
    // Predicated region
    $region6: #{dqn_forward.1} parent=1 // pred_check
      _
    $region7: #{dqn_forward.1} parent=1 // pred_check_branch
      %17 = sbr.rel (0) target = $region9
    $region8: #{dqn_forward.1} parent=1 // pred_region
      _
    $region9: #{dqn_forward.1} parent=1 // pred_fallthru
      _
    // Predicated region
    $region10: #{dqn_forward.1} parent=1 // pred_check
      _
    $region11: #{dqn_forward.1} parent=1 // pred_check_branch
      %19 = sbr.rel (0) target = $region13
    $region12: #{dqn_forward.1} parent=1 // pred_region
      _
    $region13: #{dqn_forward.1} parent=1 // pred_fallthru
      _
    // Predicated region
    $region14: #{dqn_forward.1} parent=1 // pred_check
      _
    $region15: #{dqn_forward.1} parent=1 // pred_check_branch
      %21 = sbr.rel (0) target = $region17
    $region16: #{dqn_forward.1} parent=1 // pred_region
      %s23 = ssub.s32 4096, 4096
      %24 = vsyncadd [#allocation3], %s23
      %s25 = sshll.u32 [#allocation2], 4
      %s26 = int_to_ptr.vmem [resolvable:$true] %s25
      %31 = dma.hbm_to_vmem [thread:$0]  %s3, 4096, %s26, [#allocation3], 128, 128, 8
    $region17: #{dqn_forward.1} parent=1 // pred_fallthru
      _
    // Predicated region
    $region18: #{dqn_forward.1} parent=1 // pred_check
      _
    $region19: #{dqn_forward.1} parent=1 // pred_check_branch
      %33 = sbr.rel (0) target = $region21
    $region20: #{dqn_forward.1} parent=1 // pred_region
      _
    $region21: #{dqn_forward.1} parent=1 // pred_fallthru
      _
    // Predicated region
    $region22: #{dqn_forward.1} parent=1 // pred_check
      _
    $region23: #{dqn_forward.1} parent=1 // pred_check_branch
      %35 = sbr.rel (0) target = $region25
    $region24: #{dqn_forward.1} parent=1 // pred_region
      %s37 = ssub.s32 2048, 2048
      %38 = vsyncadd [#allocation5], %s37
      %s39 = sshll.u32 [#allocation4], 4
      %s40 = int_to_ptr.vmem [resolvable:$true] %s39
      %45 = dma.hbm_to_vmem [thread:$0]  %s5, 2048, %s40, [#allocation5], 64, 64, 4
    $region25: #{dqn_forward.1} parent=1 // pred_fallthru
      _
    // Predicated region
    $region26: #{dqn_forward.1} parent=1 // pred_check
      _
    $region27: #{dqn_forward.1} parent=1 // pred_check_branch
      %47 = sbr.rel (0) target = $region29
    $region28: #{dqn_forward.1} parent=1 // pred_region
      _
    $region29: #{dqn_forward.1} parent=1 // pred_fallthru
      _
    // Predicated region
    $region30: #{dqn_forward.1} parent=1 // pred_check
      _
    $region31: #{dqn_forward.1} parent=1 // pred_check_branch
      %49 = sbr.rel (0) target = $region33
    $region32: #{dqn_forward.1} parent=1 // pred_region
      %50 = dma.done [#allocation3], 4096
    $region33: #{dqn_forward.1} parent=1 // pred_fallthru
      _
    // Predicated region
    $region34: #{dqn_forward.1} parent=1 // pred_check
      _
    $region35: #{dqn_forward.1} parent=1 // pred_check_branch
      %52 = sbr.rel (0) target = $region37
    $region36: #{dqn_forward.1} parent=1 // pred_region
      %53 = dma.done [#allocation5], 2048
    $region37: #{dqn_forward.1} parent=1 // pred_fallthru
      _
    %v55 = vld [vmem:[%s0] sm:$0xf]
    %v56 = vld [vmem:[%s0 + $0x4] sm:$0xf]
    %v57 = vld [vmem:[%s1] sm:$0xff]
    %v58 = vld [vmem:[%s1 + $0x8] sm:$0xff]
    %v59 = vld [vmem:[%s2] sm:$0x3]
    %v61 = vlaneseq
    %v62 = vshrl.u32 %v61, 7
    %v63 = vsub.s32 0, %v62
    %v64 = vrot.slane %v59, %v63
    %v65 = vlaneseq
    %v66 = vshrl.u32 %v65, 7
    %v67 = vsub.s32 1, %v66
    %v68 = vrot.slane %v59, %v67
    %v73 = vunpack.c.l.b16 %v55
    %v74 = vunpack.c.l.b16 %v56
    %v75 = vpack.c.b16 %v74, %v73
    %v78 = vunpack.c.l.b16 %v57
    %v79 = vunpack.c.h.b16 %v57
    %v80 = vunpack.c.l.b16 %v58
    %v81 = vunpack.c.h.b16 %v58
    %v82 = vpack.c.b16 %v80, %v78
    %v83 = vpack.c.b16 %v81, %v79
    %vm86 = vcmask 130048
    %v88 = vsel %vm86, %v75, 0
    %90 = vmatprep.subr.bf16.mxu0 %v83
    %91 = vmatpush1.bf16.msra.mxu0 %v82
    %92 = vmatprep.subr.bf16.mxu0 0
    %93 = vmatpush1.bf16.msra.mxu0 0
    %94 = vmatprep.subr.bf16.mxu0 0
    %95 = vmatpush1.bf16.msra.mxu0 0
    %96 = vmatprep.subr.bf16.mxu0 0
    %97 = vmatpush1.bf16.msra.mxu0 0
    %98 = vmatprep.subr.bf16.mxu0 0
    %99 = vmatpush1.bf16.msra.mxu0 0
    %100 = vmatprep.subr.bf16.mxu0 0
    %101 = vmatpush1.bf16.msra.mxu0 0
    %102 = vmatprep.subr.bf16.mxu0 0
    %103 = vmatpush1.bf16.msra.mxu0 0
    %104 = vmatprep.subr.bf16.mxu0 0
    %105 = vmatpush1.bf16.msra.mxu0 0
    %106 = vmatprep.subr.bf16.mxu0 0
    %107 = vmatpush1.bf16.msra.mxu0 0
    %108 = vmatprep.subr.bf16.mxu0 0
    %109 = vmatpush1.bf16.msra.mxu0 0
    %110 = vmatprep.subr.bf16.mxu0 0
    %111 = vmatpush1.bf16.msra.mxu0 0
    %112 = vmatprep.subr.bf16.mxu0 0
    %113 = vmatpush1.bf16.msra.mxu0 0
    %114 = vmatprep.subr.bf16.mxu0 0
    %115 = vmatpush1.bf16.msra.mxu0 0
    %116 = vmatprep.subr.bf16.mxu0 0
    %117 = vmatpush1.bf16.msra.mxu0 0
    %118 = vmatprep.subr.bf16.mxu0 0
    %119 = vmatpush1.bf16.msra.mxu0 0
    %120 = vmatprep.subr.bf16.mxu0 0
    %121 = vmatpush1.bf16.msra.mxu0 0
    %122 = vmatprep.mubr.bf16.mxu0 0
    %123 = vmatmul.mubr.bf16.gmra.mrb[0].mxu0 %v88
    %v124 = vpop.f32.mrb[0].mxu0
    %v125 = vadd.f32 %v64, %v124
    %v126 = vpop.f32.mrb[0].mxu0
    %v127 = vadd.f32 %v68, %v126
    %v128 = vpop.f32.mrb[0].mxu0
    %v129 = vadd.f32 %v64, %v128
    %v130 = vpop.f32.mrb[0].mxu0
    %v131 = vadd.f32 %v68, %v130
    %132 = vdwg.mxu0
    %v133 = vmax.f32 %v125, 0.0
    %v134 = vmax.f32 %v127, 0.0
    %v135 = vmax.f32 %v129, 0.0
    %v136 = vmax.f32 %v131, 0.0
    %v137 = vpack.c.bf16 %v135, %v133
    %v138 = vpack.c.bf16 %v136, %v134
    %v139 = vld [vmem:[#allocation2] sm:$0xff]
    %v140 = vld [vmem:[#allocation2 + $0x8] sm:$0xff]
    %v141 = vld [vmem:[#allocation2 + $0x10] sm:$0xff]
    %v142 = vld [vmem:[#allocation2 + $0x18] sm:$0xff]
    %v143 = vld [vmem:[#allocation2 + $0x20] sm:$0xff]
    %v144 = vld [vmem:[#allocation2 + $0x28] sm:$0xff]
    %v145 = vld [vmem:[#allocation2 + $0x30] sm:$0xff]
    %v146 = vld [vmem:[#allocation2 + $0x38] sm:$0xff]
    %v147 = vld [vmem:[#allocation2 + $0x40] sm:$0xff]
    %v148 = vld [vmem:[#allocation2 + $0x48] sm:$0xff]
    %v149 = vld [vmem:[#allocation2 + $0x50] sm:$0xff]
    %v150 = vld [vmem:[#allocation2 + $0x58] sm:$0xff]
    %v151 = vld [vmem:[#allocation2 + $0x60] sm:$0xff]
    %v152 = vld [vmem:[#allocation2 + $0x68] sm:$0xff]
    %v153 = vld [vmem:[#allocation2 + $0x70] sm:$0xff]
    %v154 = vld [vmem:[#allocation2 + $0x78] sm:$0xff]
    %v155 = vld [vmem:[#allocation2 + $0x80] sm:$0xff]
    %v156 = vld [vmem:[#allocation2 + $0x88] sm:$0xff]
    %v157 = vld [vmem:[#allocation2 + $0x90] sm:$0xff]
    %v158 = vld [vmem:[#allocation2 + $0x98] sm:$0xff]
    %v159 = vld [vmem:[#allocation2 + $0xa0] sm:$0xff]
    %v160 = vld [vmem:[#allocation2 + $0xa8] sm:$0xff]
    %v161 = vld [vmem:[#allocation2 + $0xb0] sm:$0xff]
    %v162 = vld [vmem:[#allocation2 + $0xb8] sm:$0xff]
    %v163 = vld [vmem:[#allocation2 + $0xc0] sm:$0xff]
    %v164 = vld [vmem:[#allocation2 + $0xc8] sm:$0xff]
    %v165 = vld [vmem:[#allocation2 + $0xd0] sm:$0xff]
    %v166 = vld [vmem:[#allocation2 + $0xd8] sm:$0xff]
    %v167 = vld [vmem:[#allocation2 + $0xe0] sm:$0xff]
    %v168 = vld [vmem:[#allocation2 + $0xe8] sm:$0xff]
    %v169 = vld [vmem:[#allocation2 + $0xf0] sm:$0xff]
    %v170 = vld [vmem:[#allocation2 + $0xf8] sm:$0xff]
    %v171 = vld [vmem:[%s4] sm:$0x3]
    %v173 = vlaneseq
    %v174 = vshrl.u32 %v173, 7
    %v175 = vsub.s32 0, %v174
    %v176 = vrot.slane %v171, %v175
    %v177 = vlaneseq
    %v178 = vshrl.u32 %v177, 7
    %v179 = vsub.s32 1, %v178
    %v180 = vrot.slane %v171, %v179
    %v215 = vunpack.c.l.b16 %v139
    %v216 = vunpack.c.h.b16 %v139
    %v217 = vunpack.c.l.b16 %v140
    %v218 = vunpack.c.h.b16 %v140
    %v219 = vunpack.c.l.b16 %v141
    %v220 = vunpack.c.h.b16 %v141
    %v221 = vunpack.c.l.b16 %v142
    %v222 = vunpack.c.h.b16 %v142
    %v223 = vunpack.c.l.b16 %v143
    %v224 = vunpack.c.h.b16 %v143
    %v225 = vunpack.c.l.b16 %v144
    %v226 = vunpack.c.h.b16 %v144
    %v227 = vunpack.c.l.b16 %v145
    %v228 = vunpack.c.h.b16 %v145
    %v229 = vunpack.c.l.b16 %v146
    %v230 = vunpack.c.h.b16 %v146
    %v231 = vunpack.c.l.b16 %v147
    %v232 = vunpack.c.h.b16 %v147
    %v233 = vunpack.c.l.b16 %v148
    %v234 = vunpack.c.h.b16 %v148
    %v235 = vunpack.c.l.b16 %v149
    %v236 = vunpack.c.h.b16 %v149
    %v237 = vunpack.c.l.b16 %v150
    %v238 = vunpack.c.h.b16 %v150
    %v239 = vunpack.c.l.b16 %v151
    %v240 = vunpack.c.h.b16 %v151
    %v241 = vunpack.c.l.b16 %v152
    %v242 = vunpack.c.h.b16 %v152
    %v243 = vunpack.c.l.b16 %v153
    %v244 = vunpack.c.h.b16 %v153
    %v245 = vunpack.c.l.b16 %v154
    %v246 = vunpack.c.h.b16 %v154
    %v247 = vunpack.c.l.b16 %v155
    %v248 = vunpack.c.h.b16 %v155
    %v249 = vunpack.c.l.b16 %v156
    %v250 = vunpack.c.h.b16 %v156
    %v251 = vunpack.c.l.b16 %v157
    %v252 = vunpack.c.h.b16 %v157
    %v253 = vunpack.c.l.b16 %v158
    %v254 = vunpack.c.h.b16 %v158
    %v255 = vunpack.c.l.b16 %v159
    %v256 = vunpack.c.h.b16 %v159
    %v257 = vunpack.c.l.b16 %v160
    %v258 = vunpack.c.h.b16 %v160
    %v259 = vunpack.c.l.b16 %v161
    %v260 = vunpack.c.h.b16 %v161
    %v261 = vunpack.c.l.b16 %v162
    %v262 = vunpack.c.h.b16 %v162
    %v263 = vunpack.c.l.b16 %v163
    %v264 = vunpack.c.h.b16 %v163
    %v265 = vunpack.c.l.b16 %v164
    %v266 = vunpack.c.h.b16 %v164
    %v267 = vunpack.c.l.b16 %v165
    %v268 = vunpack.c.h.b16 %v165
    %v269 = vunpack.c.l.b16 %v166
    %v270 = vunpack.c.h.b16 %v166
    %v271 = vunpack.c.l.b16 %v167
    %v272 = vunpack.c.h.b16 %v167
    %v273 = vunpack.c.l.b16 %v168
    %v274 = vunpack.c.h.b16 %v168
    %v275 = vunpack.c.l.b16 %v169
    %v276 = vunpack.c.h.b16 %v169
    %v277 = vunpack.c.l.b16 %v170
    %v278 = vunpack.c.h.b16 %v170
    %v279 = vpack.c.b16 %v217, %v215
    %v280 = vpack.c.b16 %v218, %v216
    %v281 = vpack.c.b16 %v221, %v219
    %v282 = vpack.c.b16 %v222, %v220
    %v283 = vpack.c.b16 %v225, %v223
    %v284 = vpack.c.b16 %v226, %v224
    %v285 = vpack.c.b16 %v229, %v227
    %v286 = vpack.c.b16 %v230, %v228
    %v287 = vpack.c.b16 %v233, %v231
    %v288 = vpack.c.b16 %v234, %v232
    %v289 = vpack.c.b16 %v237, %v235
    %v290 = vpack.c.b16 %v238, %v236
    %v291 = vpack.c.b16 %v241, %v239
    %v292 = vpack.c.b16 %v242, %v240
    %v293 = vpack.c.b16 %v245, %v243
    %v294 = vpack.c.b16 %v246, %v244
    %v295 = vpack.c.b16 %v249, %v247
    %v296 = vpack.c.b16 %v250, %v248
    %v297 = vpack.c.b16 %v253, %v251
    %v298 = vpack.c.b16 %v254, %v252
    %v299 = vpack.c.b16 %v257, %v255
    %v300 = vpack.c.b16 %v258, %v256
    %v301 = vpack.c.b16 %v261, %v259
    %v302 = vpack.c.b16 %v262, %v260
    %v303 = vpack.c.b16 %v265, %v263
    %v304 = vpack.c.b16 %v266, %v264
    %v305 = vpack.c.b16 %v269, %v267
    %v306 = vpack.c.b16 %v270, %v268
    %v307 = vpack.c.b16 %v273, %v271
    %v308 = vpack.c.b16 %v274, %v272
    %v309 = vpack.c.b16 %v277, %v275
    %v310 = vpack.c.b16 %v278, %v276
    %343 = vmatprep.subr.bf16.mxu0 %v280
    %344 = vmatpush1.bf16.msra.mxu0 %v279
    %345 = vmatprep.subr.bf16.mxu0 %v282
    %346 = vmatpush1.bf16.msra.mxu0 %v281
    %347 = vmatprep.subr.bf16.mxu0 %v284
    %348 = vmatpush1.bf16.msra.mxu0 %v283
    %349 = vmatprep.subr.bf16.mxu0 %v286
    %350 = vmatpush1.bf16.msra.mxu0 %v285
    %351 = vmatprep.subr.bf16.mxu0 %v288
    %352 = vmatpush1.bf16.msra.mxu0 %v287
    %353 = vmatprep.subr.bf16.mxu0 %v290
    %354 = vmatpush1.bf16.msra.mxu0 %v289
    %355 = vmatprep.subr.bf16.mxu0 %v292
    %356 = vmatpush1.bf16.msra.mxu0 %v291
    %357 = vmatprep.subr.bf16.mxu0 %v294
    %358 = vmatpush1.bf16.msra.mxu0 %v293
    %359 = vmatprep.subr.bf16.mxu0 %v296
    %360 = vmatpush1.bf16.msra.mxu0 %v295
    %361 = vmatprep.subr.bf16.mxu0 %v298
    %362 = vmatpush1.bf16.msra.mxu0 %v297
    %363 = vmatprep.subr.bf16.mxu0 %v300
    %364 = vmatpush1.bf16.msra.mxu0 %v299
    %365 = vmatprep.subr.bf16.mxu0 %v302
    %366 = vmatpush1.bf16.msra.mxu0 %v301
    %367 = vmatprep.subr.bf16.mxu0 %v304
    %368 = vmatpush1.bf16.msra.mxu0 %v303
    %369 = vmatprep.subr.bf16.mxu0 %v306
    %370 = vmatpush1.bf16.msra.mxu0 %v305
    %371 = vmatprep.subr.bf16.mxu0 %v308
    %372 = vmatpush1.bf16.msra.mxu0 %v307
    %373 = vmatprep.subr.bf16.mxu0 %v310
    %374 = vmatpush1.bf16.msra.mxu0 %v309
    %375 = vmatprep.mubr.bf16.mxu0 %v138
    %376 = vmatmul.mubr.bf16.gmra.mrb[0].mxu0 %v137
    %v377 = vpop.f32.mrb[0].mxu0
    %v378 = vadd.f32 %v176, %v377
    %v379 = vpop.f32.mrb[0].mxu0
    %v380 = vadd.f32 %v180, %v379
    %v381 = vpop.f32.mrb[0].mxu0
    %v382 = vadd.f32 %v176, %v381
    %v383 = vpop.f32.mrb[0].mxu0
    %v384 = vadd.f32 %v180, %v383
    %385 = vdwg.mxu0
    %v386 = vmax.f32 %v378, 0.0
    %v387 = vmax.f32 %v380, 0.0
    %v388 = vmax.f32 %v382, 0.0
    %v389 = vmax.f32 %v384, 0.0
    %v390 = vpack.c.bf16 %v388, %v386
    %v391 = vpack.c.bf16 %v389, %v387
    %v392 = vld [vmem:[#allocation4] sm:$0xf]
    %v393 = vld [vmem:[#allocation4 + $0x4] sm:$0xf]
    %v394 = vld [vmem:[#allocation4 + $0x8] sm:$0xf]
    %v395 = vld [vmem:[#allocation4 + $0xc] sm:$0xf]
    %v396 = vld [vmem:[#allocation4 + $0x10] sm:$0xf]
    %v397 = vld [vmem:[#allocation4 + $0x14] sm:$0xf]
    %v398 = vld [vmem:[#allocation4 + $0x18] sm:$0xf]
    %v399 = vld [vmem:[#allocation4 + $0x1c] sm:$0xf]
    %v400 = vld [vmem:[#allocation4 + $0x20] sm:$0xf]
    %v401 = vld [vmem:[#allocation4 + $0x24] sm:$0xf]
    %v402 = vld [vmem:[#allocation4 + $0x28] sm:$0xf]
    %v403 = vld [vmem:[#allocation4 + $0x2c] sm:$0xf]
    %v404 = vld [vmem:[#allocation4 + $0x30] sm:$0xf]
    %v405 = vld [vmem:[#allocation4 + $0x34] sm:$0xf]
    %v406 = vld [vmem:[#allocation4 + $0x38] sm:$0xf]
    %v407 = vld [vmem:[#allocation4 + $0x3c] sm:$0xf]
    %v408 = vld [vmem:[#allocation4 + $0x40] sm:$0xf]
    %v409 = vld [vmem:[#allocation4 + $0x44] sm:$0xf]
    %v410 = vld [vmem:[#allocation4 + $0x48] sm:$0xf]
    %v411 = vld [vmem:[#allocation4 + $0x4c] sm:$0xf]
    %v412 = vld [vmem:[#allocation4 + $0x50] sm:$0xf]
    %v413 = vld [vmem:[#allocation4 + $0x54] sm:$0xf]
    %v414 = vld [vmem:[#allocation4 + $0x58] sm:$0xf]
    %v415 = vld [vmem:[#allocation4 + $0x5c] sm:$0xf]
    %v416 = vld [vmem:[#allocation4 + $0x60] sm:$0xf]
    %v417 = vld [vmem:[#allocation4 + $0x64] sm:$0xf]
    %v418 = vld [vmem:[#allocation4 + $0x68] sm:$0xf]
    %v419 = vld [vmem:[#allocation4 + $0x6c] sm:$0xf]
    %v420 = vld [vmem:[#allocation4 + $0x70] sm:$0xf]
    %v421 = vld [vmem:[#allocation4 + $0x74] sm:$0xf]
    %v422 = vld [vmem:[#allocation4 + $0x78] sm:$0xf]
    %v423 = vld [vmem:[#allocation4 + $0x7c] sm:$0xf]
    %v424 = vld [vmem:[%s6] sm:$0x1]
    %v426 = vlaneseq
    %v427 = vshrl.u32 %v426, 7
    %v428 = vsub.s32 0, %v427
    %v429 = vrot.slane %v424, %v428
    %v463 = vunpack.c.l.b16 %v392
    %v464 = vunpack.c.l.b16 %v393
    %v465 = vunpack.c.l.b16 %v394
    %v466 = vunpack.c.l.b16 %v395
    %v467 = vunpack.c.l.b16 %v396
    %v468 = vunpack.c.l.b16 %v397
    %v469 = vunpack.c.l.b16 %v398
    %v470 = vunpack.c.l.b16 %v399
    %v471 = vunpack.c.l.b16 %v400
    %v472 = vunpack.c.l.b16 %v401
    %v473 = vunpack.c.l.b16 %v402
    %v474 = vunpack.c.l.b16 %v403
    %v475 = vunpack.c.l.b16 %v404
    %v476 = vunpack.c.l.b16 %v405
    %v477 = vunpack.c.l.b16 %v406
    %v478 = vunpack.c.l.b16 %v407
    %v479 = vunpack.c.l.b16 %v408
    %v480 = vunpack.c.l.b16 %v409
    %v481 = vunpack.c.l.b16 %v410
    %v482 = vunpack.c.l.b16 %v411
    %v483 = vunpack.c.l.b16 %v412
    %v484 = vunpack.c.l.b16 %v413
    %v485 = vunpack.c.l.b16 %v414
    %v486 = vunpack.c.l.b16 %v415
    %v487 = vunpack.c.l.b16 %v416
    %v488 = vunpack.c.l.b16 %v417
    %v489 = vunpack.c.l.b16 %v418
    %v490 = vunpack.c.l.b16 %v419
    %v491 = vunpack.c.l.b16 %v420
    %v492 = vunpack.c.l.b16 %v421
    %v493 = vunpack.c.l.b16 %v422
    %v494 = vunpack.c.l.b16 %v423
    %v495 = vpack.c.b16 %v464, %v463
    %v496 = vpack.c.b16 %v466, %v465
    %v497 = vpack.c.b16 %v468, %v467
    %v498 = vpack.c.b16 %v470, %v469
    %v499 = vpack.c.b16 %v472, %v471
    %v500 = vpack.c.b16 %v474, %v473
    %v501 = vpack.c.b16 %v476, %v475
    %v502 = vpack.c.b16 %v478, %v477
    %v503 = vpack.c.b16 %v480, %v479
    %v504 = vpack.c.b16 %v482, %v481
    %v505 = vpack.c.b16 %v484, %v483
    %v506 = vpack.c.b16 %v486, %v485
    %v507 = vpack.c.b16 %v488, %v487
    %v508 = vpack.c.b16 %v490, %v489
    %v509 = vpack.c.b16 %v492, %v491
    %v510 = vpack.c.b16 %v494, %v493
    %527 = vmatprep.subr.bf16.mxu0 0
    %528 = vmatpush1.bf16.msra.mxu0 %v495
    %529 = vmatprep.subr.bf16.mxu0 0
    %530 = vmatpush1.bf16.msra.mxu0 %v496
    %531 = vmatprep.subr.bf16.mxu0 0
    %532 = vmatpush1.bf16.msra.mxu0 %v497
    %533 = vmatprep.subr.bf16.mxu0 0
    %534 = vmatpush1.bf16.msra.mxu0 %v498
    %535 = vmatprep.subr.bf16.mxu0 0
    %536 = vmatpush1.bf16.msra.mxu0 %v499
    %537 = vmatprep.subr.bf16.mxu0 0
    %538 = vmatpush1.bf16.msra.mxu0 %v500
    %539 = vmatprep.subr.bf16.mxu0 0
    %540 = vmatpush1.bf16.msra.mxu0 %v501
    %541 = vmatprep.subr.bf16.mxu0 0
    %542 = vmatpush1.bf16.msra.mxu0 %v502
    %543 = vmatprep.subr.bf16.mxu0 0
    %544 = vmatpush1.bf16.msra.mxu0 %v503
    %545 = vmatprep.subr.bf16.mxu0 0
    %546 = vmatpush1.bf16.msra.mxu0 %v504
    %547 = vmatprep.subr.bf16.mxu0 0
    %548 = vmatpush1.bf16.msra.mxu0 %v505
    %549 = vmatprep.subr.bf16.mxu0 0
    %550 = vmatpush1.bf16.msra.mxu0 %v506
    %551 = vmatprep.subr.bf16.mxu0 0
    %552 = vmatpush1.bf16.msra.mxu0 %v507
    %553 = vmatprep.subr.bf16.mxu0 0
    %554 = vmatpush1.bf16.msra.mxu0 %v508
    %555 = vmatprep.subr.bf16.mxu0 0
    %556 = vmatpush1.bf16.msra.mxu0 %v509
    %557 = vmatprep.subr.bf16.mxu0 0
    %558 = vmatpush1.bf16.msra.mxu0 %v510
    %559 = vmatprep.mubr.bf16.mxu0 %v391
    %560 = vmatmul.mubr.bf16.gmra.mrb[0].mxu0 %v390
    %v561 = vpop.f32.mrb[0].mxu0
    %v562 = vadd.f32 %v429, %v561
    %v563 = vpop.f32.mrb[0].mxu0
    %v564 = vpop.f32.mrb[0].mxu0
    %v565 = vadd.f32 %v429, %v564
    %v566 = vpop.f32.mrb[0].mxu0
    %567 = vdwg.mxu0
    %568 = vst [vmem:[%s7] sm:$0xff] %v562
    %569 = vst [vmem:[%s7 + $0x8] sm:$0xff] %v565
    // Predicated region
    $region38: #{dqn_forward.1} parent=1 // pred_check
      _
    $region39: #{dqn_forward.1} parent=1 // pred_check_branch
      %571 = sbr.rel (0) target = $region41
    $region40: #{dqn_forward.1} parent=1 // pred_region
      _
    $region41: #{dqn_forward.1} parent=1 // pred_fallthru
      _
    // Predicated region
    $region42: #{dqn_forward.1} parent=1 // pred_check
      _
    $region43: #{dqn_forward.1} parent=1 // pred_check_branch
      %573 = sbr.rel (0) target = $region45
    $region44: #{dqn_forward.1} parent=1 // pred_region
      _
    $region45: #{dqn_forward.1} parent=1 // pred_fallthru
      _
    %574 = vsyncpa [#allocation3], 1
    %575 = vsyncpa [#allocation5], 1

</llo_original>
